<compile_context>
chip_gen: v6e
topology: v6e:2x2x1
jax: 0.10.0
libtpu: 0.0.40
codegen_flags: <defaults>
</compile_context>

<pallas_src>
import functools

import jax
import jax.numpy as jnp
from jax.experimental import pallas as pl
from jax.experimental.pallas import tpu as pltpu


# ----------------------------------------------------------------------------
# AntiRectifier: Pallas kernel + gated wrapper
# ----------------------------------------------------------------------------
def _antirectifier_kernel(x_ref, o_ref):
    # x_ref block: (rows, CL); o_ref block: (rows, 2*CL)
    x = x_ref[...]
    cl = x.shape[-1]
    pos = jnp.maximum(x, 0)
    o_ref[:, :cl] = pos            # relu(x)
    o_ref[:, cl:] = pos - x        # relu(-x) == relu(x) - x (incl. +/-0, NaN)


def antirectifier_ref(x):
    """Pure-jnp reference; also the small-shape fast path (fusible by XLA)."""
    return jnp.concatenate([jnp.maximum(x, 0), jnp.maximum(-x, 0)], axis=1)


def _choose_tile_rows(B, CL, itemsize, block_budget_bytes, min_grid_steps):
    """Sublane-aligned row tile within the VMEM block budget.

    Returns None when no legal tile fits (caller falls back to jnp).
    """
    sub = max(8, 32 // max(1, itemsize))      # 8 f32, 16 bf16, 32 int8/fp8
    bytes_per_row = CL * itemsize
    rows_budget = block_budget_bytes // bytes_per_row
    if rows_budget < 1:
        return None                           # a single row blows the budget
    # Aim for >= min_grid_steps steps (pipelining; both v7x TCs) within budget.
    rows_target = min(rows_budget, max(1, pl.cdiv(B, min_grid_steps)))
    if rows_target >= B:
        return B                              # one block covers all rows
    rows = (rows_target // sub) * sub
    if rows == 0:                             # rounding pushed below one sublane tile
        if sub <= rows_budget:
            rows = sub
        elif B <= rows_budget:
            rows = B                          # full-extent block is always legal
        else:
            return None
    return min(rows, B)


def antirectifier(x, *, block_budget_bytes=4 * 1024 * 1024, min_grid_steps=8,
                  size_threshold_elems=1 << 20, force_pallas=False):
    """cat(relu(x), relu(-x), axis=1) for NCHW input.

    Pallas kernel for large, 128-lane-aligned problems; fusible jnp fallback
    otherwise (small shapes, unaligned CL, or blocks that would not fit VMEM).
    """
    B, C, H, W = x.shape
    CL = C * H * W
    itemsize = jnp.dtype(x.dtype).itemsize

    big_enough = (B * CL >= size_threshold_elems)
    lane_aligned = (CL % 128 == 0)            # both half-stores unmasked, full width
    if not force_pallas and not (big_enough and lane_aligned):
        return antirectifier_ref(x)

    tile_rows = _choose_tile_rows(B, CL, itemsize, block_budget_bytes,
                                  min_grid_steps)
    if tile_rows is None:
        # TODO(synk): a lane-tiled (second grid axis) variant would be needed
        # for extremely large CL; fall back to XLA instead of blowing VMEM.
        return antirectifier_ref(x)

    grid = (pl.cdiv(B, tile_rows),)
    block_in_bytes = tile_rows * CL * itemsize
    # Resident footprint: input block double-buffered (2x) + 2*CL-wide output
    # block double-buffered (4x) = 6x an input block.  Add slack, keep v7x-safe.
    vmem_limit = min(max(6 * block_in_bytes + (4 << 20), 16 << 20), 64 << 20)

    x2 = x.reshape(B, CL)                     # lane-dense 2D view (free)
    out2 = pl.pallas_call(
        _antirectifier_kernel,
        out_shape=jax.ShapeDtypeStruct((B, 2 * CL), x.dtype),
        grid=grid,
        in_specs=[pl.BlockSpec((tile_rows, CL), lambda i: (i, 0))],
        out_specs=pl.BlockSpec((tile_rows, 2 * CL), lambda i: (i, 0)),
        compiler_params=pltpu.CompilerParams(
            dimension_semantics=("parallel",),
            vmem_limit_bytes=int(vmem_limit),
        ),
    )(x2)
    # Pure reshape back to NCHW: memory order already matches
    # torch.cat((relu(x), relu(-x)), dim=1).
    return out2.reshape(B, 2 * C, H, W)


# ----------------------------------------------------------------------------
# two_orders_block: remaining ops (layout + tiny convs, kept in XLA)
# ----------------------------------------------------------------------------
def reorder(x, nr, k):
    B, C = x.shape[0], x.shape[1]
    r = x.reshape(B, C, k, nr, k, nr)
    r = jnp.transpose(r, (0, 1, 3, 2, 5, 4))
    return r.reshape(B, C, k * nr, k * nr)


def order_back(x, nr, k):
    return reorder(x, k, nr)


# TODO(synk): 2x2 conv / deconv with 2-8 channels left to lax.conv (no useful
# MXU-sized Pallas tiling at these shapes).
def conv2d(x, w, b):
    # x: (B, Cin, H, W); w: (Cout, Cin, kh, kw); b: (Cout,)   (PyTorch Conv2d)
    out = jax.lax.conv_general_dilated(
        x, w, window_strides=(1, 1), padding="VALID",
        dimension_numbers=("NCHW", "OIHW", "NCHW"))
    return out + b[None, :, None, None]


def conv_transpose2d(x, w, b):
    # PyTorch ConvTranspose2d, stride=1, padding=0; w: (Cin, Cout, kh, kw).
    # Equivalent to a full-padding correlation with the spatially flipped,
    # I/O-swapped kernel.
    kh, kw = w.shape[2], w.shape[3]
    w_oihw = jnp.transpose(jnp.flip(w, axis=(2, 3)), (1, 0, 2, 3))
    out = jax.lax.conv_general_dilated(
        x, w_oihw, window_strides=(1, 1),
        padding=((kh - 1, kh - 1), (kw - 1, kw - 1)),
        dimension_numbers=("NCHW", "OIHW", "NCHW"))
    return out + b[None, :, None, None]


def two_orders_block_forward(params, x, nr, k, antirect_fn=antirectifier):
    y = reorder(x, nr, k)
    y = conv2d(y, params["yconv_w"], params["yconv_b"])
    y = antirect_fn(y)
    y = conv_transpose2d(y, params["ydeconv_w"], params["ydeconv_b"])
    y = order_back(y, nr, k)
    xx = conv2d(x, params["xconv_w"], params["xconv_b"])
    xx = antirect_fn(xx)
    xx = conv_transpose2d(xx, params["xdeconv_w"], params["xdeconv_b"])
    out = jnp.concatenate((xx, y), axis=1)
    # TODO(synk): nn.Dropout treated as inference-mode identity (no mask/scale).
    return out


# ----------------------------------------------------------------------------
# Demo / correctness check
# ----------------------------------------------------------------------------
if __name__ == "__main__":
    key = jax.random.PRNGKey(0)
    B, cin, Nr, K, S = 2, 2, 4, 4, 4
    HW = Nr * K  # 16

    keys = jax.random.split(key, 10)
    x = jax.random.normal(keys[0], (B, cin, HW, HW), dtype=jnp.float32)
    params = {
        "yconv_w":   0.1 * jax.random.normal(keys[1], (S, cin, 2, 2), jnp.float32),
        "yconv_b":   0.1 * jax.random.normal(keys[2], (S,), jnp.float32),
        "xconv_w":   0.1 * jax.random.normal(keys[3], (S, cin, 2, 2), jnp.float32),
        "xconv_b":   0.1 * jax.random.normal(keys[4], (S,), jnp.float32),
        "ydeconv_w": 0.1 * jax.random.normal(keys[5], (2 * S, 2 * S, 2, 2), jnp.float32),
        "ydeconv_b": 0.1 * jax.random.normal(keys[6], (2 * S,), jnp.float32),
        "xdeconv_w": 0.1 * jax.random.normal(keys[7], (2 * S, 2 * S, 2, 2), jnp.float32),
        "xdeconv_b": 0.1 * jax.random.normal(keys[8], (2 * S,), jnp.float32),
    }

    # 1) Pallas kernel on a lane-aligned shape (CL = 8*16*16 = 2048, % 128 == 0),
    #    forced so the size gate doesn't route to the jnp fast path.
    xa = jax.random.normal(keys[9], (16, 8, 16, 16), dtype=jnp.float32)
    ya = jax.block_until_ready(antirectifier(xa, force_pallas=True))
    assert ya.shape == (16, 16, 16, 16) and ya.dtype == xa.dtype
    assert jnp.allclose(ya, antirectifier_ref(xa), atol=1e-6)

    # 2) Pallas kernel at the model-internal (unaligned, CL=900) shape — still
    #    correct, just not the preferred perf path.
    ar_in = conv2d(x, params["xconv_w"], params["xconv_b"])        # (2, 4, 15, 15)
    ar_out = jax.block_until_ready(antirectifier(ar_in, force_pallas=True))
    assert ar_out.shape == (B, 2 * S, HW - 1, HW - 1), ar_out.shape
    assert jnp.allclose(ar_out, antirectifier_ref(ar_in), atol=1e-6)

    # 3) Full two_orders_block forward:
    #    - forced-Pallas antirectifier inside (exercises the kernel end-to-end),
    #    - default size-gated path (falls back to fusible jnp at these tiny shapes),
    #    - pure-jnp reference.
    ar_forced = functools.partial(antirectifier, force_pallas=True)
    out_pallas = jax.block_until_ready(
        two_orders_block_forward(params, x, Nr, K, antirect_fn=ar_forced))
    out_gated = two_orders_block_forward(params, x, Nr, K)
    ref = two_orders_block_forward(params, x, Nr, K, antirect_fn=antirectifier_ref)
    assert out_pallas.shape == (B, 4 * S, HW, HW), out_pallas.shape
    assert jnp.allclose(out_pallas, ref, atol=1e-5, rtol=1e-5), "pallas mismatch"
    assert jnp.allclose(out_gated, ref, atol=1e-5, rtol=1e-5), "gated mismatch"

    print("KERNEL_OK")
</pallas_src>

<mosaic_0001>
module attributes {stable_mosaic.version = 11 : i64} {
  func.func @_antirectifier_kernel(%arg0: i32, %arg1: memref<8x2048xf32, #tpu.memory_space<vmem>>, %arg2: memref<8x4096xf32, #tpu.memory_space<vmem>>) attributes {dimension_semantics = [#tpu.dimension_semantics<parallel>], iteration_bounds = array<i64: 2>, scalar_prefetch = 0 : i64, scratch_operands = 0 : i64, tpu.core_type = #tpu.core_type<tc>, window_params = [{transform_indices = @transform_0, window_bounds = array<i64: 8, 2048>}, {transform_indices = @transform_1, window_bounds = array<i64: 8, 4096>}]} {
    %c0 = arith.constant 0 : index
    %c0_0 = arith.constant 0 : index
    %0 = vector.load %arg1[%c0, %c0_0] : memref<8x2048xf32, #tpu.memory_space<vmem>>, vector<8x2048xf32>
    %cst = arith.constant 0.000000e+00 : f32
    %1 = vector.broadcast %cst : f32 to vector<8x2048xf32>
    %2 = arith.maximumf %0, %1 : vector<8x2048xf32>
    %c0_1 = arith.constant 0 : index
    %c0_2 = arith.constant 0 : index
    %3 = vector.load %arg2[%c0_1, %c0_2] : memref<8x4096xf32, #tpu.memory_space<vmem>>, vector<8x2048xf32>
    tpu.vector_store %arg2[%c0_1, %c0_2], %2 {strides = array<i32>} : memref<8x4096xf32, #tpu.memory_space<vmem>>, vector<8x2048xf32>,
    %4 = arith.subf %2, %0 : vector<8x2048xf32>
    %c0_3 = arith.constant 0 : index
    %c2048 = arith.constant 2048 : index
    %5 = vector.load %arg2[%c0_3, %c2048] : memref<8x4096xf32, #tpu.memory_space<vmem>>, vector<8x2048xf32>
    tpu.vector_store %arg2[%c0_3, %c2048], %4 {strides = array<i32>} : memref<8x4096xf32, #tpu.memory_space<vmem>>, vector<8x2048xf32>,
    return
  }
  func.func @transform_0(%arg0: i32) -> (i32, i32) {
    %c0_i32 = arith.constant 0 : i32
    %c0_i32_0 = arith.constant 0 : i32
    return %arg0, %c0_i32 : i32, i32
  }
  func.func @transform_1(%arg0: i32) -> (i32, i32) {
    %c0_i32 = arith.constant 0 : i32
    %c0_i32_0 = arith.constant 0 : i32
    return %arg0, %c0_i32 : i32, i32
  }
}

</mosaic_0001>

<llo_original>
// kernel: tpu_custom_call.1
$region0: #{tpu_custom_call.1}
  #allocation0 [shape = 'u32[]', space=smem, size = 0x4, offset = 0x4, fixed_abs, tag = 'smem constant byte address 0x4 - core index']
  #allocation1 [shape = 'u32[144,128]{1,0:T(1,128)}', space=vmem, size = 0x12000, scoped, tag = 'internal scratch']
  %s0 = inlined_call_operand.hbm [shape: f32[16,2048], index: 0, kind: input, shape index: {}]
  %s1 = inlined_call_operand.hbm [shape: f32[16,4096], index: 1, kind: output, shape index: {}]
  %s2 = sld [smem:[#allocation0]]
  $region41: #{tpu_custom_call.1} parent=0
    _
  %s4 = ssub.s32 1, %s2
  %s5 = scalar_select 0, %s4, %s2
  $region1: #{tpu_custom_call.1} parent=0
    #allocation2 [shape = 'u8[131072]{0}', space=vmem, size = 0x20000, scoped, tag = 'input window, operand 0']
    #allocation3 [shape = 's32[2]{0}', space=sflag, size = 0x8, scoped, tag = 'scoped memory for tpu_custom_call.1']
    #allocation4 [shape = 's32[2]{0}', space=sflag, size = 0x8, scoped, tag = 'scoped memory for tpu_custom_call.1']
    #allocation5 [shape = 'u8[262144]{0}', space=vmem, size = 0x40000, scoped, tag = 'output window, operand 0']
    %6 = vsyncpa [#allocation3], 0
    %s7 = scalar_lea.sflag [#allocation3], 1
    %8 = vsyncpa %s7, 0
    %9 = vsyncpa [#allocation4], 0
    %s10 = scalar_lea.sflag [#allocation4], 1
    %11 = vsyncpa %s10, 0
    loop: start=0, step=1, limit=4
    $region2: #{tpu_custom_call.1} parent=1 // loop_pre_header
      _
    $region3: #{tpu_custom_call.1} parent=1 // loop_header
      %s13 = sphi 0, %s17
      %p14 = scmp.ge.s32.totalorder %s13, 4
      %s23 = sphi 0, %s25
      %s26 = sphi 0, %s23
      %s27 = sphi 0, %s26
      %s43 = sphi 0, %s27
      %s49 = sphi 0, %s51
      %s52 = sphi 0, %s49
      %s53 = sphi 0, %s52
      %s69 = sphi 0, %s53
    $region4: #{tpu_custom_call.1} parent=1 // loop_header_branch
      %16 = sbr.rel (%p14) target = $region8
    $region5: #{tpu_custom_call.1} parent=1 // loop_body
      %s18 = ssub.s32 %s13, 1
      %s19 = ssub.s32 %s13, 2
      %s20 = sadd.s32 %s13, 1
      %s21 = ssub.s32 %s13, %s20
      %p22 = scmp.eq.s32.totalorder %s21, 0
      %s24 = sadd.s32 %s23, 1
      %s25 = scalar_select %p22, %s23, %s24
      %p28 = pneg %p22
      %p29 = scmp.eq.s32.totalorder %s13, 1
      %p30 = por %p28, %p29
      %p31 = scmp.ne.s32.totalorder %s23, %s26
      %p32 = scmp.eq.s32.totalorder %s13, 0
      %p33 = por %p31, %p32
      %p34 = scmp.ne.s32.totalorder %s23, %s26
      %p35 = scmp.eq.s32.totalorder %s18, 1
      %p36 = por %p34, %p35
      %p37 = scmp.ne.s32.totalorder %s26, %s27
      %p38 = scmp.eq.s32.totalorder %s18, 0
      %p39 = por %p37, %p38
      %p40 = scmp.ne.s32.totalorder %s26, %s27
      %p41 = scmp.eq.s32.totalorder %s19, 1
      %p42 = por %p40, %p41
      %p44 = scmp.ne.s32.totalorder %s27, %s43
      %p45 = scmp.eq.s32.totalorder %s19, 0
      %p46 = por %p44, %p45
      %s47 = ssub.s32 %s13, %s20
      %p48 = scmp.eq.s32.totalorder %s47, 0
      %s50 = sadd.s32 %s49, 1
      %s51 = scalar_select %p48, %s49, %s50
      %p54 = pneg %p48
      %p55 = scmp.eq.s32.totalorder %s13, 1
      %p56 = por %p54, %p55
      %p57 = scmp.ne.s32.totalorder %s49, %s52
      %p58 = scmp.eq.s32.totalorder %s13, 0
      %p59 = por %p57, %p58
      %p60 = scmp.ne.s32.totalorder %s49, %s52
      %p61 = scmp.eq.s32.totalorder %s18, 1
      %p62 = por %p60, %p61
      %p63 = scmp.ne.s32.totalorder %s52, %s53
      %p64 = scmp.eq.s32.totalorder %s18, 0
      %p65 = por %p63, %p64
      %p66 = scmp.ne.s32.totalorder %s52, %s53
      %p67 = scmp.eq.s32.totalorder %s19, 1
      %p68 = por %p66, %p67
      %p70 = scmp.ne.s32.totalorder %s53, %s69
      %p71 = scmp.eq.s32.totalorder %s19, 0
      %p72 = por %p70, %p71
      %p73 = scmp.le.s32.totalorder 1, %s13
      %p74 = scmp.lt.s32.totalorder %s13, 3
      %p75 = pnand %p73, %p74
      %p76 = pneg %p75
      // Predicated region
      $region9: #{tpu_custom_call.1} parent=5 // pred_check
        _
      $region10: #{tpu_custom_call.1} parent=5 // pred_check_branch
        %78 = sbr.rel (%p75) target = $region12
      $region11: #{tpu_custom_call.1} parent=5 // pred_region
        %s79 = ssub.s32 %s13, 1
      $region12: #{tpu_custom_call.1} parent=5 // pred_fallthru
        _
      %p80 = scmp.lt.s32.totalorder %s13, 2
      // Predicated region
      $region13: #{tpu_custom_call.1} parent=5 // pred_check
        %p81 = pneg %p80
      $region14: #{tpu_custom_call.1} parent=5 // pred_check_branch
        %83 = sbr.rel (%p81) target = $region16
      $region15: #{tpu_custom_call.1} parent=5 // pred_region
        // Predicated region
        $region17: #{tpu_custom_call.1} parent=15 // pred_check
          %p84 = pneg %p33
        $region18: #{tpu_custom_call.1} parent=15 // pred_check_branch
          %86 = sbr.rel (%p84) target = $region20
        $region19: #{tpu_custom_call.1} parent=15 // pred_region
          %s87 = sand.u32 %s23, 1
          %s88 = scalar_lea.sflag [#allocation3], %s87
          %s89 = sand.u32 %s23, 1
          %s90 = smul.addr %s89, 128
          %s91 = scalar_lea.vmem [#allocation2], %s90
          %s93 = ssub.s32 2048, 2048
          %94 = vsyncadd %s88, %s93
          %s95 = smul.addr %s13, 16
          %s96 = smul.addr %s95, 128
          %s97 = scalar_lea.hbm %s0, %s96
          %s99 = sshll.u32 %s91, 4
          %s100 = int_to_ptr.vmem [resolvable:$true] %s99
          %102 = dma.hbm_to_vmem [thread:$0]  %s97, 2048, %s100, %s88
        $region20: #{tpu_custom_call.1} parent=15 // pred_fallthru
          _
      $region16: #{tpu_custom_call.1} parent=5 // pred_fallthru
        _
      %p103 = scmp.le.s32.totalorder 1, %s13
      %p104 = scmp.lt.s32.totalorder %s13, 3
      %p105 = pnand %p103, %p104
      %p106 = pneg %p105
      // Predicated region
      $region21: #{tpu_custom_call.1} parent=5 // pred_check
        _
      $region22: #{tpu_custom_call.1} parent=5 // pred_check_branch
        %108 = sbr.rel (%p105) target = $region24
      $region23: #{tpu_custom_call.1} parent=5 // pred_region
        %s109 = ssub.s32 %s13, 1
        %s110 = sand.u32 %s26, 1
        %s111 = scalar_lea.sflag [#allocation3], %s110
        %s112 = sand.u32 %s26, 1
        %s113 = smul.addr %s112, 128
        %s114 = scalar_lea.vmem [#allocation2], %s113
        // Predicated region
        $region25: #{tpu_custom_call.1} parent=23 // pred_check
          %p115 = pneg %p39
        $region26: #{tpu_custom_call.1} parent=23 // pred_check_branch
          %117 = sbr.rel (%p115) target = $region28
        $region27: #{tpu_custom_call.1} parent=23 // pred_region
          %118 = dma.done %s111, 2048
        $region28: #{tpu_custom_call.1} parent=23 // pred_fallthru
          _
        %s119 = sand.u32 %s26, 1
        %s120 = scalar_lea.sflag [#allocation3], %s119
        %s121 = sand.u32 %s26, 1
        %s122 = smul.addr %s121, 128
        %s123 = scalar_lea.vmem [#allocation2], %s122
        %p124 = pneg %p39
        %p125 = pneg %p36
        %p126 = pneg %p65
        %p127 = pneg %p62
        %s128 = sand.u32 %s52, 1
        %s129 = scalar_lea.sflag [#allocation4], %s128
        %s130 = sand.u32 %s52, 1
        %s131 = smul.addr %s130, 256
        %s132 = scalar_lea.vmem [#allocation5], %s131
        %v133 = vld [vmem:[%s114] sm:$0xff]
        %v134 = vld [vmem:[%s114 + $0x8] sm:$0xff]
        %v135 = vld [vmem:[%s114 + $0x10] sm:$0xff]
        %v136 = vld [vmem:[%s114 + $0x18] sm:$0xff]
        %v137 = vld [vmem:[%s114 + $0x20] sm:$0xff]
        %v138 = vld [vmem:[%s114 + $0x28] sm:$0xff]
        %v139 = vld [vmem:[%s114 + $0x30] sm:$0xff]
        %v140 = vld [vmem:[%s114 + $0x38] sm:$0xff]
        %v141 = vld [vmem:[%s114 + $0x40] sm:$0xff]
        %v142 = vld [vmem:[%s114 + $0x48] sm:$0xff]
        %v143 = vld [vmem:[%s114 + $0x50] sm:$0xff]
        %v144 = vld [vmem:[%s114 + $0x58] sm:$0xff]
        %v145 = vld [vmem:[%s114 + $0x60] sm:$0xff]
        %v146 = vld [vmem:[%s114 + $0x68] sm:$0xff]
        %v147 = vld [vmem:[%s114 + $0x70] sm:$0xff]
        %v148 = vld [vmem:[%s114 + $0x78] sm:$0xff]
        %v149 = vmax.f32 %v133, 0.0
        %v150 = vmax.f32 %v134, 0.0
        %v151 = vmax.f32 %v135, 0.0
        %v152 = vmax.f32 %v136, 0.0
        %v153 = vmax.f32 %v137, 0.0
        %v154 = vmax.f32 %v138, 0.0
        %v155 = vmax.f32 %v139, 0.0
        %v156 = vmax.f32 %v140, 0.0
        %v157 = vmax.f32 %v141, 0.0
        %v158 = vmax.f32 %v142, 0.0
        %v159 = vmax.f32 %v143, 0.0
        %v160 = vmax.f32 %v144, 0.0
        %v161 = vmax.f32 %v145, 0.0
        %v162 = vmax.f32 %v146, 0.0
        %v163 = vmax.f32 %v147, 0.0
        %v164 = vmax.f32 %v148, 0.0
        %165 = vst [vmem:[%s132] sm:$0xff] %v149
        %166 = vst [vmem:[%s132 + $0x8] sm:$0xff] %v150
        %167 = vst [vmem:[%s132 + $0x10] sm:$0xff] %v151
        %168 = vst [vmem:[%s132 + $0x18] sm:$0xff] %v152
        %169 = vst [vmem:[%s132 + $0x20] sm:$0xff] %v153
        %170 = vst [vmem:[%s132 + $0x28] sm:$0xff] %v154
        %171 = vst [vmem:[%s132 + $0x30] sm:$0xff] %v155
        %172 = vst [vmem:[%s132 + $0x38] sm:$0xff] %v156
        %173 = vst [vmem:[%s132 + $0x40] sm:$0xff] %v157
        %174 = vst [vmem:[%s132 + $0x48] sm:$0xff] %v158
        %175 = vst [vmem:[%s132 + $0x50] sm:$0xff] %v159
        %176 = vst [vmem:[%s132 + $0x58] sm:$0xff] %v160
        %177 = vst [vmem:[%s132 + $0x60] sm:$0xff] %v161
        %178 = vst [vmem:[%s132 + $0x68] sm:$0xff] %v162
        %179 = vst [vmem:[%s132 + $0x70] sm:$0xff] %v163
        %180 = vst [vmem:[%s132 + $0x78] sm:$0xff] %v164
        %v181 = vsub.f32 %v149, %v133
        %v182 = vsub.f32 %v150, %v134
        %v183 = vsub.f32 %v151, %v135
        %v184 = vsub.f32 %v152, %v136
        %v185 = vsub.f32 %v153, %v137
        %v186 = vsub.f32 %v154, %v138
        %v187 = vsub.f32 %v155, %v139
        %v188 = vsub.f32 %v156, %v140
        %v189 = vsub.f32 %v157, %v141
        %v190 = vsub.f32 %v158, %v142
        %v191 = vsub.f32 %v159, %v143
        %v192 = vsub.f32 %v160, %v144
        %v193 = vsub.f32 %v161, %v145
        %v194 = vsub.f32 %v162, %v146
        %v195 = vsub.f32 %v163, %v147
        %v196 = vsub.f32 %v164, %v148
        %197 = vst [vmem:[%s132 + $0x80] sm:$0xff] %v181
        %198 = vst [vmem:[%s132 + $0x88] sm:$0xff] %v182
        %199 = vst [vmem:[%s132 + $0x90] sm:$0xff] %v183
        %200 = vst [vmem:[%s132 + $0x98] sm:$0xff] %v184
        %201 = vst [vmem:[%s132 + $0xa0] sm:$0xff] %v185
        %202 = vst [vmem:[%s132 + $0xa8] sm:$0xff] %v186
        %203 = vst [vmem:[%s132 + $0xb0] sm:$0xff] %v187
        %204 = vst [vmem:[%s132 + $0xb8] sm:$0xff] %v188
        %205 = vst [vmem:[%s132 + $0xc0] sm:$0xff] %v189
        %206 = vst [vmem:[%s132 + $0xc8] sm:$0xff] %v190
        %207 = vst [vmem:[%s132 + $0xd0] sm:$0xff] %v191
        %208 = vst [vmem:[%s132 + $0xd8] sm:$0xff] %v192
        %209 = vst [vmem:[%s132 + $0xe0] sm:$0xff] %v193
        %210 = vst [vmem:[%s132 + $0xe8] sm:$0xff] %v194
        %211 = vst [vmem:[%s132 + $0xf0] sm:$0xff] %v195
        %212 = vst [vmem:[%s132 + $0xf8] sm:$0xff] %v196
        %s213 = sand.u32 %s52, 1
        %s214 = scalar_lea.sflag [#allocation4], %s213
        %s215 = sand.u32 %s52, 1
        %s216 = smul.addr %s215, 256
        %s217 = scalar_lea.vmem [#allocation5], %s216
        // Predicated region
        $region29: #{tpu_custom_call.1} parent=23 // pred_check
          %p218 = pneg %p62
        $region30: #{tpu_custom_call.1} parent=23 // pred_check_branch
          %220 = sbr.rel (%p218) target = $region32
        $region31: #{tpu_custom_call.1} parent=23 // pred_region
          %s222 = ssub.s32 4096, 4096
          %223 = vsyncadd %s214, %s222
          %s224 = smul.addr %s18, 32
          %s225 = smul.addr %s224, 128
          %s226 = scalar_lea.hbm %s1, %s225
          %s228 = sshll.u32 %s217, 4
          %s229 = int_to_ptr.vmem [resolvable:$true] %s228
          %231 = dma.vmem_to_hbm [thread:$0]  %s229, 4096, %s226, %s214
        $region32: #{tpu_custom_call.1} parent=23 // pred_fallthru
          _
      $region24: #{tpu_custom_call.1} parent=5 // pred_fallthru
        _
      %p232 = scmp.le.s32.totalorder 2, %s13
      // Predicated region
      $region33: #{tpu_custom_call.1} parent=5 // pred_check
        %p233 = pneg %p232
      $region34: #{tpu_custom_call.1} parent=5 // pred_check_branch
        %235 = sbr.rel (%p233) target = $region36
      $region35: #{tpu_custom_call.1} parent=5 // pred_region
        %s236 = ssub.s32 %s13, 2
        // Predicated region
        $region37: #{tpu_custom_call.1} parent=35 // pred_check
          %p237 = pneg %p68
        $region38: #{tpu_custom_call.1} parent=35 // pred_check_branch
          %239 = sbr.rel (%p237) target = $region40
        $region39: #{tpu_custom_call.1} parent=35 // pred_region
          %s240 = sand.u32 %s53, 1
          %s241 = scalar_lea.sflag [#allocation4], %s240
          %s242 = sand.u32 %s53, 1
          %s243 = smul.addr %s242, 256
          %s244 = scalar_lea.vmem [#allocation5], %s243
          %245 = dma.done %s241, 4096
        $region40: #{tpu_custom_call.1} parent=35 // pred_fallthru
          _
      $region36: #{tpu_custom_call.1} parent=5 // pred_fallthru
        _
    $region6: #{tpu_custom_call.1} parent=1 // loop_footer
      %s17 = sadd.s32 1, %s13
    $region7: #{tpu_custom_call.1} parent=1 // loop_footer_branch
      %12 = sbr.rel target = $region3
    $region8: #{tpu_custom_call.1} parent=1 // loop_exit
      _
    %246 = vsyncpa [#allocation3], 1
    %s247 = scalar_lea.sflag [#allocation3], 1
    %248 = vsyncpa %s247, 1
    %249 = vsyncpa [#allocation4], 1
    %s250 = scalar_lea.sflag [#allocation4], 1
    %251 = vsyncpa %s250, 1

</llo_original>
